<compile_context>
chip_gen: v7x
topology: tpu7x:2x2x1
jax: 0.10.0
libtpu: 0.0.40
codegen_flags: <defaults>
</compile_context>

<pallas_src>
import functools

import jax
import jax.numpy as jnp
from jax.experimental import pallas as pl
from jax.experimental.pallas import tpu as pltpu

LANES = 128
SUBLANES = 8


def _round_up(x, m):
    return ((x + m - 1) // m) * m


def _block_partial(x):
    """Reduce a (block_rows, 128) f32 value to one (8, 128) vreg of partial sums.

    The reshape only splits the sublane-tiled leading dim (never crosses an
    (8, 128) vreg boundary); the axis-0 sum is a tree of elementwise VPU adds.
    """
    rows = x.shape[0]
    return jnp.sum(x.reshape(rows // SUBLANES, SUBLANES, LANES), axis=0)


def _mse_sum_kernel(pred_ref, gt_ref, sum_ref, *, num_rows, block_rows, ragged):
    pred = pred_ref[...].astype(jnp.float32)
    gt = gt_ref[...].astype(jnp.float32)
    diff = pred - gt
    sq = diff * diff

    if not ragged:
        # Every block is fully in-bounds (any lane/row zero-pad has diff == 0).
        sum_ref[0] = _block_partial(sq)
    else:
        i = pl.program_id(0)
        last = pl.num_programs(0) - 1

        @pl.when(i != last)
        def _():
            sum_ref[0] = _block_partial(sq)

        @pl.when(i == last)
        def _():
            # OOB rows of the ragged tail block contain garbage: mask them.
            rows_left = num_rows - i * block_rows
            row_ok = jax.lax.broadcasted_iota(jnp.int32, sq.shape, 0) < rows_left
            sum_ref[0] = _block_partial(jnp.where(row_ok, sq, 0.0))


def _mse_masked_kernel(pred_ref, gt_ref, out_ref, *, max_depth, num_rows,
                       block_rows, ragged):
    pred = pred_ref[...].astype(jnp.float32)
    gt = gt_ref[...].astype(jnp.float32)
    diff = pred - gt
    valid = gt > 0.0
    if max_depth is not None:
        valid = jnp.logical_and(valid, gt <= max_depth)

    def emit(v, use_select):
        vf = v.astype(jnp.float32)
        if use_select:
            sq = jnp.where(v, diff * diff, 0.0)   # garbage/NaN-safe for OOB rows
        else:
            sq = diff * diff * vf                 # drops the vselect (review)
        # Packed partials: rows [0:8] = sum, rows [8:16] = count.
        out_ref[0, :SUBLANES, :] = _block_partial(sq)
        out_ref[0, SUBLANES:, :] = _block_partial(vf)

    if not ragged:
        emit(valid, use_select=False)
    else:
        i = pl.program_id(0)
        last = pl.num_programs(0) - 1

        @pl.when(i != last)
        def _():
            emit(valid, use_select=False)

        @pl.when(i == last)
        def _():
            rows_left = num_rows - i * block_rows
            row_ok = jax.lax.broadcasted_iota(jnp.int32, gt.shape, 0) < rows_left
            emit(jnp.logical_and(valid, row_ok), use_select=True)


def _tpu_limits():
    """Generation-aware (block_rows cap, vmem_limit_bytes)."""
    vmem_phys = 64 * 1024 * 1024          # conservative default (v7x physical)
    try:
        vmem_phys = int(pltpu.get_tpu_info().vmem_capacity_bytes)
    except Exception:
        pass
    if vmem_phys >= 96 * 1024 * 1024:     # v5e / v6e: 128 MiB physical VMEM
        return 16384, 80 * 1024 * 1024    # 2x2x8 MiB buffers + temporaries
    return 8192, 48 * 1024 * 1024         # v7x / unknown: 64 MiB physical


def _num_tensorcores():
    try:
        info = pltpu.get_tpu_info()
        for name in ("num_cores", "tensorcores_per_chip", "num_tensorcores",
                     "cores_per_chip"):
            v = getattr(info, name, None)
            if v is not None:
                return max(1, int(v))
    except Exception:
        pass
    return 1


def mse_loss_pallas(depth_pred, depth_gt, *, valid_mask=False, loss_weight=1.0,
                    max_depth=None, block_rows_cap=None):
    """Pallas equivalent of MSELoss.forward (returns a scalar)."""
    assert depth_pred.shape == depth_gt.shape
    total = int(depth_pred.size)
    assert total > 0

    itemsize = min(jnp.dtype(depth_pred.dtype).itemsize,
                   jnp.dtype(depth_gt.dtype).itemsize, 4)
    row_align = SUBLANES * max(1, 4 // itemsize)   # 8 for f32, 16 for bf16/f16

    max_rows, vmem_limit = _tpu_limits()
    if block_rows_cap is not None:                 # testing / tuning override
        max_rows = _round_up(int(block_rows_cap), row_align)

    pred_flat = depth_pred.reshape(-1)
    gt_flat = depth_gt.reshape(-1)

    # Tiny lane pad (<128 elements) only when numel is not 128-aligned. The
    # zero pad is semantically inert: diff == 0 for the plain sum (count uses
    # the true `total`) and gt == 0 fails the validity test. Block-level
    # (multi-MiB) padding is never done; the ragged tail is masked in-kernel.
    lane_pad = (-total) % LANES
    if lane_pad:
        pred_flat = jnp.pad(pred_flat, (0, lane_pad))
        gt_flat = jnp.pad(gt_flat, (0, lane_pad))
    num_rows = (total + lane_pad) // LANES

    pred2d = pred_flat.reshape(num_rows, LANES)
    gt2d = gt_flat.reshape(num_rows, LANES)

    block_rows = min(max_rows, _round_up(num_rows, row_align))
    if num_rows < block_rows:
        # Tiny single-block input: pad the few missing rows with zeros (inert)
        # so the block never exceeds the array.
        row_pad = block_rows - num_rows
        pred2d = jnp.pad(pred2d, ((0, row_pad), (0, 0)))
        gt2d = jnp.pad(gt2d, ((0, row_pad), (0, 0)))
        num_rows = block_rows

    num_blocks = pl.cdiv(num_rows, block_rows)
    ragged = (num_rows % block_rows) != 0

    in_specs = [
        pl.BlockSpec((block_rows, LANES), lambda i: (i, 0)),
        pl.BlockSpec((block_rows, LANES), lambda i: (i, 0)),
    ]

    # Per-block partials are independent -> safe to split across TensorCores.
    # CORE_PARALLEL is what actually shards across the 2 TCs on v7x; use it
    # only when it divides evenly, otherwise fall back to "parallel".
    cores = _num_tensorcores()
    if cores > 1 and num_blocks >= cores and num_blocks % cores == 0:
        dim_sem = (pltpu.CORE_PARALLEL,)
    else:
        dim_sem = ("parallel",)

    compiler_params = pltpu.CompilerParams(
        dimension_semantics=dim_sem,
        vmem_limit_bytes=vmem_limit,
    )

    if valid_mask:
        kernel = functools.partial(
            _mse_masked_kernel,
            max_depth=None if max_depth is None else float(max_depth),
            num_rows=num_rows, block_rows=block_rows, ragged=ragged)
        parts = pl.pallas_call(
            kernel,
            out_shape=jax.ShapeDtypeStruct((num_blocks, 2 * SUBLANES, LANES),
                                           jnp.float32),
            grid_spec=pltpu.PrefetchScalarGridSpec(
                num_scalar_prefetch=0,
                grid=(num_blocks,),
                in_specs=in_specs,
                out_specs=pl.BlockSpec((1, 2 * SUBLANES, LANES),
                                       lambda i: (i, 0, 0))),
            compiler_params=compiler_params,
        )(pred2d, gt2d)
        total_sum = jnp.sum(parts[:, :SUBLANES, :])
        total_cnt = jnp.sum(parts[:, SUBLANES:, :])
        # Empty selection -> divide by zero (inf/nan), matching nn.MSELoss on
        # an empty tensor.
    else:
        kernel = functools.partial(
            _mse_sum_kernel,
            num_rows=num_rows, block_rows=block_rows, ragged=ragged)
        parts = pl.pallas_call(
            kernel,
            out_shape=jax.ShapeDtypeStruct((num_blocks, SUBLANES, LANES),
                                           jnp.float32),
            grid_spec=pltpu.PrefetchScalarGridSpec(
                num_scalar_prefetch=0,
                grid=(num_blocks,),
                in_specs=in_specs,
                out_specs=pl.BlockSpec((1, SUBLANES, LANES),
                                       lambda i: (i, 0, 0))),
            compiler_params=compiler_params,
        )(pred2d, gt2d)
        total_sum = jnp.sum(parts)
        total_cnt = jnp.float32(total)   # compile-time constant count

    return jnp.float32(loss_weight) * total_sum / total_cnt


if __name__ == "__main__":
    key = jax.random.PRNGKey(0)
    k1, k2 = jax.random.split(key)

    # NCHW depth maps, small shapes.
    B, C, H, W = 2, 4, 16, 16
    depth_pred = jax.random.uniform(k1, (B, C, H, W), jnp.float32,
                                    minval=0.0, maxval=10.0)
    # gt has some non-positive entries so valid_mask actually filters.
    depth_gt = jax.random.uniform(k2, (B, C, H, W), jnp.float32,
                                  minval=-2.0, maxval=10.0)

    # Default module config (valid_mask=False) and masked config.
    loss_plain = mse_loss_pallas(depth_pred, depth_gt,
                                 valid_mask=False, loss_weight=1.0)
    loss_masked = mse_loss_pallas(depth_pred, depth_gt,
                                  valid_mask=True, loss_weight=1.0,
                                  max_depth=8.0)
    jax.block_until_ready((loss_plain, loss_masked))

    ref_plain = jnp.mean((depth_pred - depth_gt) ** 2)
    m = jnp.logical_and(depth_gt > 0, depth_gt <= 8.0)
    ref_masked = jnp.sum(jnp.where(m, (depth_pred - depth_gt) ** 2, 0.0)) / \
        jnp.sum(m.astype(jnp.float32))
    assert jnp.allclose(loss_plain, ref_plain, rtol=1e-5, atol=1e-5)
    assert jnp.allclose(loss_masked, ref_masked, rtol=1e-5, atol=1e-5)

    # Ragged-tail path (in-kernel tail masking) exercised via a small cap:
    # 2*3*20*16 = 1920 elems = 15 rows of 128; cap 8 -> blocks of 8 rows,
    # last block has 7 valid rows.
    k3, k4 = jax.random.split(k1)
    p2 = jax.random.uniform(k3, (2, 3, 20, 16), jnp.float32, minval=0., maxval=10.)
    g2 = jax.random.uniform(k4, (2, 3, 20, 16), jnp.float32, minval=-2., maxval=10.)
    lp2 = mse_loss_pallas(p2, g2, valid_mask=False, block_rows_cap=8)
    lm2 = mse_loss_pallas(p2, g2, valid_mask=True, max_depth=8.0,
                          block_rows_cap=8)
    jax.block_until_ready((lp2, lm2))
    rp2 = jnp.mean((p2 - g2) ** 2)
    m2 = jnp.logical_and(g2 > 0, g2 <= 8.0)
    rm2 = jnp.sum(jnp.where(m2, (p2 - g2) ** 2, 0.0)) / jnp.sum(m2.astype(jnp.float32))
    assert jnp.allclose(lp2, rp2, rtol=1e-5, atol=1e-5)
    assert jnp.allclose(lm2, rm2, rtol=1e-5, atol=1e-5)

    # Native bf16 inputs (halved HBM bytes; cast to f32 happens in-kernel).
    pred_bf = depth_pred.astype(jnp.bfloat16)
    gt_bf = depth_gt.astype(jnp.bfloat16)
    loss_bf = mse_loss_pallas(pred_bf, gt_bf, valid_mask=False)
    jax.block_until_ready(loss_bf)
    ref_bf = jnp.mean((pred_bf.astype(jnp.float32) - gt_bf.astype(jnp.float32)) ** 2)
    assert jnp.allclose(loss_bf, ref_bf, rtol=1e-4, atol=1e-4)

    print("KERNEL_OK")
</pallas_src>

<mosaic_0001>
module attributes {stable_mosaic.version = 11 : i64} {
  func.func @_mse_sum_kernel(%arg0: i32, %arg1: memref<16x128xf32, #tpu.memory_space<vmem>>, %arg2: memref<16x128xf32, #tpu.memory_space<vmem>>, %arg3: memref<1x8x128xf32, #tpu.memory_space<vmem>>) attributes {dimension_semantics = [#tpu.dimension_semantics<parallel>], iteration_bounds = array<i64: 1>, scalar_prefetch = 0 : i64, scratch_operands = 0 : i64, tpu.core_type = #tpu.core_type<tc>, window_params = [{transform_indices = @transform_0, window_bounds = array<i64: 16, 128>}, {transform_indices = @transform_1, window_bounds = array<i64: 16, 128>}, {transform_indices = @transform_2, window_bounds = array<i64: 1, 8, 128>}]} {
    %c0 = arith.constant 0 : index
    %c0_0 = arith.constant 0 : index
    %0 = vector.load %arg1[%c0, %c0_0] : memref<16x128xf32, #tpu.memory_space<vmem>>, vector<16x128xf32>
    %c0_1 = arith.constant 0 : index
    %c0_2 = arith.constant 0 : index
    %1 = vector.load %arg2[%c0_1, %c0_2] : memref<16x128xf32, #tpu.memory_space<vmem>>, vector<16x128xf32>
    %2 = arith.subf %0, %1 : vector<16x128xf32>
    %3 = arith.mulf %2, %2 : vector<16x128xf32>
    %4 = vector.shape_cast %3 : vector<16x128xf32> to vector<2x8x128xf32>
    %cst = arith.constant dense<0.000000e+00> : vector<8x128xf32>
    %5 = vector.multi_reduction <add>, %4, %cst [0] : vector<2x8x128xf32> to vector<8x128xf32>
    %c0_3 = arith.constant 0 : index
    %c0_4 = arith.constant 0 : index
    %c0_5 = arith.constant 0 : index
    %6 = vector.load %arg3[%c0_3, %c0_4, %c0_5] : memref<1x8x128xf32, #tpu.memory_space<vmem>>, vector<1x8x128xf32>
    %7 = vector.shape_cast %6 : vector<1x8x128xf32> to vector<8x128xf32>
    %8 = vector.shape_cast %5 : vector<8x128xf32> to vector<1x8x128xf32>
    tpu.vector_store %arg3[%c0_3, %c0_4, %c0_5], %8 {strides = array<i32>} : memref<1x8x128xf32, #tpu.memory_space<vmem>>, vector<1x8x128xf32>,
    return
  }
  func.func @transform_0(%arg0: i32) -> (i32, i32) {
    %c0_i32 = arith.constant 0 : i32
    %c0_i32_0 = arith.constant 0 : i32
    return %arg0, %c0_i32 : i32, i32
  }
  func.func @transform_1(%arg0: i32) -> (i32, i32) {
    %c0_i32 = arith.constant 0 : i32
    %c0_i32_0 = arith.constant 0 : i32
    return %arg0, %c0_i32 : i32, i32
  }
  func.func @transform_2(%arg0: i32) -> (i32, i32, i32) {
    %c0_i32 = arith.constant 0 : i32
    %c0_i32_0 = arith.constant 0 : i32
    %c0_i32_1 = arith.constant 0 : i32
    return %arg0, %c0_i32, %c0_i32_0 : i32, i32, i32
  }
}

</mosaic_0001>

<llo_original>
// kernel: tpu_custom_call.1
$region0: #{tpu_custom_call.1}
  #allocation0 [shape = 'u32[]', space=smem, size = 0x4, offset = 0x4, fixed_abs, tag = 'smem constant byte address 0x4 - core index']
  #allocation1 [shape = 'u32[144,128]{1,0:T(1,128)}', space=vmem, size = 0x12000, scoped, tag = 'internal scratch']
  %s0 = inlined_call_operand.hbm [shape: f32[16,128], index: 0, kind: input, shape index: {}]
  %s1 = inlined_call_operand.hbm [shape: f32[16,128], index: 1, kind: input, shape index: {}]
  %s2 = inlined_call_operand.hbm [shape: f32[1,8,128], index: 2, kind: output, shape index: {}]
  %s3 = sld [smem:[#allocation0]]
  $region26: #{tpu_custom_call.1} parent=0
    _
  %s5 = ssub.s32 1, %s3
  %s6 = scalar_select 0, %s5, %s3
  $region1: #{tpu_custom_call.1} parent=0
    #allocation2 [shape = 'u8[8192]{0}', space=vmem, size = 0x2000, scoped, tag = 'input window, operand 0, single buffered']
    #allocation3 [shape = 's32[1]{0}', space=sflag, size = 0x4, scoped, tag = 'scoped memory for tpu_custom_call.1']
    #allocation4 [shape = 's32[1]{0}', space=sflag, size = 0x4, scoped, tag = 'scoped memory for tpu_custom_call.1']
    #allocation5 [shape = 'u8[8192]{0}', space=vmem, size = 0x2000, scoped, tag = 'input window, operand 1, single buffered']
    #allocation6 [shape = 's32[1]{0}', space=sflag, size = 0x4, scoped, tag = 'scoped memory for tpu_custom_call.1']
    #allocation7 [shape = 'u8[4096]{0}', space=vmem, size = 0x1000, scoped, tag = 'output window, operand 0, single buffered']
    %7 = vsyncpa [#allocation3], 0
    %8 = vsyncpa [#allocation6], 0
    %9 = vsyncpa [#allocation4], 0
    // Predicated region
    $region2: #{tpu_custom_call.1} parent=1 // pred_check
      _
    $region3: #{tpu_custom_call.1} parent=1 // pred_check_branch
      %11 = sbr.rel (0) target = $region5
    $region4: #{tpu_custom_call.1} parent=1 // pred_region
      %s13 = ssub.s32 256, 256
      %14 = vsyncadd [#allocation3], %s13
      %s15 = sshll.u32 [#allocation2], 4
      %s16 = int_to_ptr.vmem [resolvable:$true] %s15
      %21 = dma.hbm_to_vmem [thread:$0]  %s0, 256, %s16, [#allocation3], 128, 128, 8
    $region5: #{tpu_custom_call.1} parent=1 // pred_fallthru
      _
    // Predicated region
    $region6: #{tpu_custom_call.1} parent=1 // pred_check
      _
    $region7: #{tpu_custom_call.1} parent=1 // pred_check_branch
      %23 = sbr.rel (0) target = $region9
    $region8: #{tpu_custom_call.1} parent=1 // pred_region
      %s25 = ssub.s32 256, 256
      %26 = vsyncadd [#allocation6], %s25
      %s27 = sshll.u32 [#allocation5], 4
      %s28 = int_to_ptr.vmem [resolvable:$true] %s27
      %33 = dma.hbm_to_vmem [thread:$0]  %s1, 256, %s28, [#allocation6], 128, 128, 8
    $region9: #{tpu_custom_call.1} parent=1 // pred_fallthru
      _
    // Predicated region
    $region10: #{tpu_custom_call.1} parent=1 // pred_check
      _
    $region11: #{tpu_custom_call.1} parent=1 // pred_check_branch
      %35 = sbr.rel (0) target = $region13
    $region12: #{tpu_custom_call.1} parent=1 // pred_region
      %36 = dma.done [#allocation3], 256
    $region13: #{tpu_custom_call.1} parent=1 // pred_fallthru
      _
    // Predicated region
    $region14: #{tpu_custom_call.1} parent=1 // pred_check
      _
    $region15: #{tpu_custom_call.1} parent=1 // pred_check_branch
      %38 = sbr.rel (0) target = $region17
    $region16: #{tpu_custom_call.1} parent=1 // pred_region
      %39 = dma.done [#allocation6], 256
    $region17: #{tpu_custom_call.1} parent=1 // pred_fallthru
      _
    %v40 = vld [vmem:[#allocation2] sm:$0xff]
    %v41 = vld [vmem:[#allocation2 + $0x8] sm:$0xff]
    %v42 = vld [vmem:[#allocation5] sm:$0xff]
    %v43 = vld [vmem:[#allocation5 + $0x8] sm:$0xff]
    %v44 = vsub.f32 %v40, %v42
    %v45 = vsub.f32 %v41, %v43
    %v46 = vmul.f32 %v44, %v44
    %v47 = vmul.f32 %v45, %v45
    %v48 = vadd.f32 %v46, %v47
    %49 = vst [vmem:[#allocation7] sm:$0xff] %v48
    // Predicated region
    $region18: #{tpu_custom_call.1} parent=1 // pred_check
      _
    $region19: #{tpu_custom_call.1} parent=1 // pred_check_branch
      %51 = sbr.rel (0) target = $region21
    $region20: #{tpu_custom_call.1} parent=1 // pred_region
      %s53 = ssub.s32 128, 128
      %54 = vsyncadd [#allocation4], %s53
      %s56 = sshll.u32 [#allocation7], 4
      %s57 = int_to_ptr.vmem [resolvable:$true] %s56
      %59 = dma.vmem_to_hbm [thread:$0]  %s57, 128, %s2, [#allocation4]
    $region21: #{tpu_custom_call.1} parent=1 // pred_fallthru
      _
    // Predicated region
    $region22: #{tpu_custom_call.1} parent=1 // pred_check
      _
    $region23: #{tpu_custom_call.1} parent=1 // pred_check_branch
      %61 = sbr.rel (0) target = $region25
    $region24: #{tpu_custom_call.1} parent=1 // pred_region
      %62 = dma.done [#allocation4], 128
    $region25: #{tpu_custom_call.1} parent=1 // pred_fallthru
      _
    %63 = vsyncpa [#allocation3], 1
    %64 = vsyncpa [#allocation6], 1
    %65 = vsyncpa [#allocation4], 1

</llo_original>
